<compile_context>
chip_gen: v7x
topology: tpu7x:2x2x1
jax: 0.10.0
libtpu: 0.0.40
codegen_flags: <defaults>
</compile_context>

<pallas_src>
import math
import jax
import jax.numpy as jnp
from jax import lax
from jax.experimental import pallas as pl
from jax.experimental.pallas import tpu as pltpu


def _make_kernel(nb, Cin, Cout, HW):
    def kernel(x_ref, w_ref, b_ref, o_ref):
        # x_ref: (nb, 9*Cin, HW)   im2col patches for nb batch images
        # w_ref: (2*Cout, 9*Cin)   fused [gate ; signal] conv weights
        # b_ref: (2*Cout, 1)       fused biases (broadcast along lanes)
        # o_ref: (nb, Cout, HW)    gated output (NCHW, spatial flattened)
        w = w_ref[...]
        b = b_ref[...]
        for i in range(nb):  # nb is tiny and static -> unrolled
            # single lane-dense matmul: (2*Cout, 9*Cin) x (9*Cin, HW) -> (2*Cout, HW)
            acc = jnp.dot(w, x_ref[i], preferred_element_type=jnp.float32) + b
            g = jax.nn.sigmoid(acc[:Cout])        # gate = sigmoid(conv_g + b_g)
            s = jnp.maximum(acc[Cout:], 0.0)      # signal = relu(conv_s + b_s)
            o_ref[i] = (s * g).astype(o_ref.dtype)

    return kernel


def gated_layer_pallas(x_nchw, gate_w, gate_b, signal_w, signal_b):
    """x_nchw: (N, Cin, H, W) float32 (PyTorch layout).
       gate_w / signal_w: (Cout, Cin, 3, 3); gate_b / signal_b: (Cout,).
       Returns (N, Cout, H, W)."""
    N, Cin, H, W = x_nchw.shape
    Cout = gate_w.shape[0]
    HW = H * W

    # ---- glue (XLA side): im2col + weight/bias re-layout --------------------
    x_pad = jnp.pad(x_nchw, ((0, 0), (0, 0), (1, 1), (1, 1)))
    taps = [x_pad[:, :, ky:ky + H, kx:kx + W].reshape(N, Cin, HW)
            for ky in range(3) for kx in range(3)]
    patches = jnp.concatenate(taps, axis=1)                     # (N, 9*Cin, HW)

    w_cat = jnp.concatenate([gate_w, signal_w], axis=0)         # (2*Cout, Cin, 3, 3)
    w2d = jnp.transpose(w_cat, (0, 2, 3, 1)).reshape(2 * Cout, 9 * Cin)
    b2d = jnp.concatenate([gate_b, signal_b]).reshape(2 * Cout, 1)

    # ---- grid: <= 2 steps (1 image/step for N=2 -> one per v7x TC) ----------
    if N >= 2 and N % 2 == 0:
        nb = N // 2
    else:
        nb = N
    num_steps = N // nb

    kernel = _make_kernel(nb, Cin, Cout, HW)

    out_flat = pl.pallas_call(
        kernel,
        out_shape=jax.ShapeDtypeStruct((N, Cout, HW), x_nchw.dtype),
        grid_spec=pltpu.PrefetchScalarGridSpec(
            num_scalar_prefetch=0,
            grid=(num_steps,),
            in_specs=[
                pl.BlockSpec((nb, 9 * Cin, HW), lambda n: (n, 0, 0)),
                pl.BlockSpec((2 * Cout, 9 * Cin), lambda n: (0, 0)),
                pl.BlockSpec((2 * Cout, 1), lambda n: (0, 0)),
            ],
            out_specs=pl.BlockSpec((nb, Cout, HW), lambda n: (n, 0, 0)),
        ),
        compiler_params=pltpu.CompilerParams(
            dimension_semantics=("parallel",)),
    )(patches, w2d, b2d)

    return out_flat.reshape(N, Cout, H, W)


def gated_layer_ref(x_nchw, gate_w, gate_b, signal_w, signal_b):
    """Pure-JAX reference (lax conv) for correctness checking."""
    dn = lax.conv_dimension_numbers(x_nchw.shape, gate_w.shape,
                                    ("NCHW", "OIHW", "NCHW"))
    conv = lambda w, b: lax.conv_general_dilated(
        x_nchw, w, (1, 1), ((1, 1), (1, 1)), dimension_numbers=dn
    ) + b.reshape(1, -1, 1, 1)
    s = jnp.maximum(conv(signal_w, signal_b), 0.0)
    g = jax.nn.sigmoid(conv(gate_w, gate_b))
    return s * g


if __name__ == "__main__":
    # module config: GatedLayer(indims=4, outdims=8, rpn_act='relu')
    N, Cin, H, W = 2, 4, 16, 16
    Cout = 8

    key = jax.random.PRNGKey(0)
    kx, kgw, ksw = jax.random.split(key, 3)

    x = jax.random.normal(kx, (N, Cin, H, W), dtype=jnp.float32)

    # deterministic param init matching the module's __init__:
    #   weights ~ N(0, sqrt(2 / (3*3*outdims))); gate bias = 1, signal bias = 0
    std = math.sqrt(2.0 / (3.0 * 3.0 * Cout))
    gate_w = std * jax.random.normal(kgw, (Cout, Cin, 3, 3), dtype=jnp.float32)
    signal_w = std * jax.random.normal(ksw, (Cout, Cin, 3, 3), dtype=jnp.float32)
    gate_b = jnp.ones((Cout,), dtype=jnp.float32)
    signal_b = jnp.zeros((Cout,), dtype=jnp.float32)

    out = gated_layer_pallas(x, gate_w, gate_b, signal_w, signal_b)
    out = jax.block_until_ready(out)

    ref = gated_layer_ref(x, gate_w, gate_b, signal_w, signal_b)
    assert out.shape == (N, Cout, H, W)
    assert jnp.allclose(out, ref, atol=1e-4, rtol=1e-4), "mismatch vs reference"

    print("KERNEL_OK")
</pallas_src>

<mosaic_0001>
module attributes {stable_mosaic.version = 11 : i64} {
  func.func @kernel(%arg0: i32, %arg1: memref<1x36x256xf32, #tpu.memory_space<vmem>>, %arg2: memref<16x36xf32, #tpu.memory_space<vmem>>, %arg3: memref<16x1xf32, #tpu.memory_space<vmem>>, %arg4: memref<1x8x256xf32, #tpu.memory_space<vmem>>) attributes {dimension_semantics = [#tpu.dimension_semantics<parallel>], iteration_bounds = array<i64: 2>, scalar_prefetch = 0 : i64, scratch_operands = 0 : i64, tpu.core_type = #tpu.core_type<tc>, window_params = [{transform_indices = @transform_0, window_bounds = array<i64: 1, 36, 256>}, {pipeline_mode = #tpu.pipeline_mode<synchronous>, transform_indices = @transform_1, window_bounds = array<i64: 16, 36>}, {pipeline_mode = #tpu.pipeline_mode<synchronous>, transform_indices = @transform_2, window_bounds = array<i64: 16, 1>}, {transform_indices = @transform_3, window_bounds = array<i64: 1, 8, 256>}]} {
    %c0 = arith.constant 0 : index
    %c0_0 = arith.constant 0 : index
    %0 = vector.load %arg2[%c0, %c0_0] : memref<16x36xf32, #tpu.memory_space<vmem>>, vector<16x36xf32>
    %c0_1 = arith.constant 0 : index
    %c0_2 = arith.constant 0 : index
    %1 = vector.load %arg3[%c0_1, %c0_2] : memref<16x1xf32, #tpu.memory_space<vmem>>, vector<16x1xf32>
    %c0_3 = arith.constant 0 : index
    %c0_4 = arith.constant 0 : index
    %c0_5 = arith.constant 0 : index
    %2 = vector.load %arg1[%c0_3, %c0_4, %c0_5] : memref<1x36x256xf32, #tpu.memory_space<vmem>>, vector<1x36x256xf32>
    %3 = vector.shape_cast %2 : vector<1x36x256xf32> to vector<36x256xf32>
    %cst = arith.constant dense<0.000000e+00> : vector<16x256xf32>
    %4 = tpu.matmul %0, %3, %cst {dimension_numbers = #tpu.dot_dimension_numbers<[1], [0], [0], [1], [0, 0, 1, 1], [], []>} : vector<16x36xf32>, vector<36x256xf32>, vector<16x256xf32> -> vector<16x256xf32>
    %5 = vector.broadcast %1 : vector<16x1xf32> to vector<16x256xf32>
    %6 = arith.addf %4, %5 : vector<16x256xf32>
    %7 = vector.extract_strided_slice %6 {offsets = [0, 0], sizes = [8, 256], strides = [1, 1]} : vector<16x256xf32> to vector<8x256xf32>
    %8 = arith.negf %7 : vector<8x256xf32>
    %9 = math.exp %8 : vector<8x256xf32>
    %cst_6 = arith.constant 1.000000e+00 : f32
    %10 = vector.broadcast %cst_6 : f32 to vector<8x256xf32>
    %11 = arith.addf %10, %9 : vector<8x256xf32>
    %12 = arith.divf %10, %11 : vector<8x256xf32>
    %13 = vector.extract_strided_slice %6 {offsets = [8, 0], sizes = [8, 256], strides = [1, 1]} : vector<16x256xf32> to vector<8x256xf32>
    %cst_7 = arith.constant 0.000000e+00 : f32
    %14 = vector.broadcast %cst_7 : f32 to vector<8x256xf32>
    %15 = arith.maximumf %13, %14 : vector<8x256xf32>
    %16 = arith.mulf %15, %12 : vector<8x256xf32>
    %c0_8 = arith.constant 0 : index
    %c0_9 = arith.constant 0 : index
    %c0_10 = arith.constant 0 : index
    %17 = vector.load %arg4[%c0_8, %c0_9, %c0_10] : memref<1x8x256xf32, #tpu.memory_space<vmem>>, vector<1x8x256xf32>
    %18 = vector.shape_cast %17 : vector<1x8x256xf32> to vector<8x256xf32>
    %19 = vector.shape_cast %16 : vector<8x256xf32> to vector<1x8x256xf32>
    tpu.vector_store %arg4[%c0_8, %c0_9, %c0_10], %19 {strides = array<i32>} : memref<1x8x256xf32, #tpu.memory_space<vmem>>, vector<1x8x256xf32>,
    return
  }
  func.func @transform_0(%arg0: i32) -> (i32, i32, i32) {
    %c0_i32 = arith.constant 0 : i32
    %c0_i32_0 = arith.constant 0 : i32
    %c0_i32_1 = arith.constant 0 : i32
    return %arg0, %c0_i32, %c0_i32_0 : i32, i32, i32
  }
  func.func @transform_1(%arg0: i32) -> (i32, i32) {
    %c0_i32 = arith.constant 0 : i32
    %c0_i32_0 = arith.constant 0 : i32
    %c0_i32_1 = arith.constant 0 : i32
    return %c0_i32, %c0_i32_0 : i32, i32
  }
  func.func @transform_2(%arg0: i32) -> (i32, i32) {
    %c0_i32 = arith.constant 0 : i32
    %c0_i32_0 = arith.constant 0 : i32
    %c0_i32_1 = arith.constant 0 : i32
    return %c0_i32, %c0_i32_0 : i32, i32
  }
  func.func @transform_3(%arg0: i32) -> (i32, i32, i32) {
    %c0_i32 = arith.constant 0 : i32
    %c0_i32_0 = arith.constant 0 : i32
    %c0_i32_1 = arith.constant 0 : i32
    return %arg0, %c0_i32, %c0_i32_0 : i32, i32, i32
  }
}

</mosaic_0001>

<llo_original>
// kernel: tpu_custom_call.1
$region0: #{tpu_custom_call.1}
  #allocation0 [shape = 'u32[]', space=smem, size = 0x4, offset = 0x4, fixed_abs, tag = 'smem constant byte address 0x4 - core index']
  #allocation1 [shape = 'u32[144,128]{1,0:T(1,128)}', space=vmem, size = 0x12000, scoped, tag = 'internal scratch']
  %s0 = inlined_call_operand.vmem [shape: f32[2,36,256], index: 0, kind: input, shape index: {}]
  %s1 = inlined_call_operand.vmem [shape: f32[16,36], index: 1, kind: input, shape index: {}]
  %s2 = inlined_call_operand.vmem [shape: f32[16,1], index: 2, kind: input, shape index: {}]
  %s3 = inlined_call_operand.hbm [shape: f32[2,8,256], index: 3, kind: output, shape index: {}]
  %s4 = sld [smem:[#allocation0]]
  $region45: #{tpu_custom_call.1} parent=0
    _
  %s6 = ssub.s32 1, %s4
  %s7 = scalar_select 0, %s6, %s4
  $region1: #{tpu_custom_call.1} parent=0
    #allocation2 [shape = 'u8[16384]{0}', space=vmem, size = 0x4000, scoped, tag = 'output window, operand 0']
    #allocation3 [shape = 's32[2]{0}', space=sflag, size = 0x8, scoped, tag = 'scoped memory for tpu_custom_call.1']
    %8 = vsyncpa [#allocation3], 0
    %s9 = scalar_lea.sflag [#allocation3], 1
    %10 = vsyncpa %s9, 0
    loop: start=0, step=1, limit=4
    $region2: #{tpu_custom_call.1} parent=1 // loop_pre_header
      _
    $region3: #{tpu_custom_call.1} parent=1 // loop_header
      %s12 = sphi 0, %s16
      %p13 = scmp.ge.s32.totalorder %s12, 4
      %s22 = sphi 0, %s24
      %s25 = sphi 0, %s22
      %s26 = sphi 0, %s25
      %s42 = sphi 0, %s26
      %s46 = sphi 0, %s46
      %s48 = sphi 0, %s46
      %s49 = sphi 0, %s48
      %s63 = sphi 0, %s49
      %s67 = sphi 0, %s67
      %s69 = sphi 0, %s67
      %s70 = sphi 0, %s69
      %s84 = sphi 0, %s70
      %s90 = sphi 0, %s92
      %s93 = sphi 0, %s90
      %s94 = sphi 0, %s93
      %s110 = sphi 0, %s94
    $region4: #{tpu_custom_call.1} parent=1 // loop_header_branch
      %15 = sbr.rel (%p13) target = $region8
    $region5: #{tpu_custom_call.1} parent=1 // loop_body
      %s17 = ssub.s32 %s12, 1
      %s18 = ssub.s32 %s12, 2
      %s19 = sadd.s32 %s12, 1
      %s20 = ssub.s32 %s12, %s19
      %p21 = scmp.eq.s32.totalorder %s20, 0
      %s23 = sadd.s32 %s22, 1
      %s24 = scalar_select %p21, %s22, %s23
      %p27 = pneg %p21
      %p28 = scmp.eq.s32.totalorder %s12, 1
      %p29 = por %p27, %p28
      %p30 = scmp.ne.s32.totalorder %s22, %s25
      %p31 = scmp.eq.s32.totalorder %s12, 0
      %p32 = por %p30, %p31
      %p33 = scmp.ne.s32.totalorder %s22, %s25
      %p34 = scmp.eq.s32.totalorder %s17, 1
      %p35 = por %p33, %p34
      %p36 = scmp.ne.s32.totalorder %s25, %s26
      %p37 = scmp.eq.s32.totalorder %s17, 0
      %p38 = por %p36, %p37
      %p39 = scmp.ne.s32.totalorder %s25, %s26
      %p40 = scmp.eq.s32.totalorder %s18, 1
      %p41 = por %p39, %p40
      %p43 = scmp.ne.s32.totalorder %s26, %s42
      %p44 = scmp.eq.s32.totalorder %s18, 0
      %p45 = por %p43, %p44
      %s47 = sadd.s32 %s46, 1
      %p50 = scmp.eq.s32.totalorder %s12, 1
      %p51 = scmp.ne.s32.totalorder %s46, %s48
      %p52 = scmp.eq.s32.totalorder %s12, 0
      %p53 = por %p51, %p52
      %p54 = scmp.ne.s32.totalorder %s46, %s48
      %p55 = scmp.eq.s32.totalorder %s17, 1
      %p56 = por %p54, %p55
      %p57 = scmp.ne.s32.totalorder %s48, %s49
      %p58 = scmp.eq.s32.totalorder %s17, 0
      %p59 = por %p57, %p58
      %p60 = scmp.ne.s32.totalorder %s48, %s49
      %p61 = scmp.eq.s32.totalorder %s18, 1
      %p62 = por %p60, %p61
      %p64 = scmp.ne.s32.totalorder %s49, %s63
      %p65 = scmp.eq.s32.totalorder %s18, 0
      %p66 = por %p64, %p65
      %s68 = sadd.s32 %s67, 1
      %p71 = scmp.eq.s32.totalorder %s12, 1
      %p72 = scmp.ne.s32.totalorder %s67, %s69
      %p73 = scmp.eq.s32.totalorder %s12, 0
      %p74 = por %p72, %p73
      %p75 = scmp.ne.s32.totalorder %s67, %s69
      %p76 = scmp.eq.s32.totalorder %s17, 1
      %p77 = por %p75, %p76
      %p78 = scmp.ne.s32.totalorder %s69, %s70
      %p79 = scmp.eq.s32.totalorder %s17, 0
      %p80 = por %p78, %p79
      %p81 = scmp.ne.s32.totalorder %s69, %s70
      %p82 = scmp.eq.s32.totalorder %s18, 1
      %p83 = por %p81, %p82
      %p85 = scmp.ne.s32.totalorder %s70, %s84
      %p86 = scmp.eq.s32.totalorder %s18, 0
      %p87 = por %p85, %p86
      %s88 = ssub.s32 %s12, %s19
      %p89 = scmp.eq.s32.totalorder %s88, 0
      %s91 = sadd.s32 %s90, 1
      %s92 = scalar_select %p89, %s90, %s91
      %p95 = pneg %p89
      %p96 = scmp.eq.s32.totalorder %s12, 1
      %p97 = por %p95, %p96
      %p98 = scmp.ne.s32.totalorder %s90, %s93
      %p99 = scmp.eq.s32.totalorder %s12, 0
      %p100 = por %p98, %p99
      %p101 = scmp.ne.s32.totalorder %s90, %s93
      %p102 = scmp.eq.s32.totalorder %s17, 1
      %p103 = por %p101, %p102
      %p104 = scmp.ne.s32.totalorder %s93, %s94
      %p105 = scmp.eq.s32.totalorder %s17, 0
      %p106 = por %p104, %p105
      %p107 = scmp.ne.s32.totalorder %s93, %s94
      %p108 = scmp.eq.s32.totalorder %s18, 1
      %p109 = por %p107, %p108
      %p111 = scmp.ne.s32.totalorder %s94, %s110
      %p112 = scmp.eq.s32.totalorder %s18, 0
      %p113 = por %p111, %p112
      %p114 = scmp.le.s32.totalorder 1, %s12
      %p115 = scmp.lt.s32.totalorder %s12, 3
      %p116 = pnand %p114, %p115
      %p117 = pneg %p116
      // Predicated region
      $region9: #{tpu_custom_call.1} parent=5 // pred_check
        _
      $region10: #{tpu_custom_call.1} parent=5 // pred_check_branch
        %119 = sbr.rel (%p116) target = $region12
      $region11: #{tpu_custom_call.1} parent=5 // pred_region
        %s120 = ssub.s32 %s12, 1
        // Predicated region
        $region13: #{tpu_custom_call.1} parent=11 // pred_check
          %p121 = pneg %p59
        $region14: #{tpu_custom_call.1} parent=11 // pred_check_branch
          %123 = sbr.rel (%p121) target = $region16
        $region15: #{tpu_custom_call.1} parent=11 // pred_region
          _
        $region16: #{tpu_custom_call.1} parent=11 // pred_fallthru
          _
        // Predicated region
        $region17: #{tpu_custom_call.1} parent=11 // pred_check
          %p124 = pneg %p80
        $region18: #{tpu_custom_call.1} parent=11 // pred_check_branch
          %126 = sbr.rel (%p124) target = $region20
        $region19: #{tpu_custom_call.1} parent=11 // pred_region
          _
        $region20: #{tpu_custom_call.1} parent=11 // pred_fallthru
          _
      $region12: #{tpu_custom_call.1} parent=5 // pred_fallthru
        _
      %p127 = scmp.lt.s32.totalorder %s12, 2
      // Predicated region
      $region21: #{tpu_custom_call.1} parent=5 // pred_check
        %p128 = pneg %p127
      $region22: #{tpu_custom_call.1} parent=5 // pred_check_branch
        %130 = sbr.rel (%p128) target = $region24
      $region23: #{tpu_custom_call.1} parent=5 // pred_region
        // Predicated region
        $region25: #{tpu_custom_call.1} parent=23 // pred_check
          %p131 = pneg %p32
        $region26: #{tpu_custom_call.1} parent=23 // pred_check_branch
          %133 = sbr.rel (%p131) target = $region28
        $region27: #{tpu_custom_call.1} parent=23 // pred_region
          %p134 = scmp.lt.s32.totalorder %s12, 1
          %s135 = scalar_select %p134, %s12, 1
          %s136 = smul.addr %s135, 10
          %s137 = smul.addr %s136, 8
          %s138 = scalar_lea.vmem %s0, %s137
        $region28: #{tpu_custom_call.1} parent=23 // pred_fallthru
          _
      $region24: #{tpu_custom_call.1} parent=5 // pred_fallthru
        _
      %p139 = scmp.le.s32.totalorder 1, %s12
      %p140 = scmp.lt.s32.totalorder %s12, 3
      %p141 = pnand %p139, %p140
      %p142 = pneg %p141
      // Predicated region
      $region29: #{tpu_custom_call.1} parent=5 // pred_check
        _
      $region30: #{tpu_custom_call.1} parent=5 // pred_check_branch
        %144 = sbr.rel (%p141) target = $region32
      $region31: #{tpu_custom_call.1} parent=5 // pred_region
        %s145 = ssub.s32 %s12, 1
        %p146 = scmp.lt.s32.totalorder %s17, 1
        %s147 = scalar_select %p146, %s17, 1
        %s148 = smul.addr %s147, 10
        %s149 = smul.addr %s148, 8
        %s150 = scalar_lea.vmem %s0, %s149
        %p151 = pneg %p38
        %p152 = pneg %p35
        %p153 = pneg %p59
        %p154 = pneg %p56
        %p155 = pneg %p80
        %p156 = pneg %p77
        %p157 = pneg %p106
        %p158 = pneg %p103
        %s159 = sand.u32 %s93, 1
        %s160 = scalar_lea.sflag [#allocation3], %s159
        %s161 = sand.u32 %s93, 1
        %s162 = smul.addr %s161, 16
        %s163 = scalar_lea.vmem [#allocation2], %s162
        %p164 = scmp.lt.s32.totalorder %s17, 1
        %s165 = scalar_select %p164, %s17, 1
        %s166 = smul.addr %s165, 10
        %s167 = smul.addr %s166, 8
        %s168 = scalar_lea.vmem %s0, %s167
        %v169 = vld [vmem:[%s1] sm:$0xff]
        %v170 = vld [vmem:[%s1 + $0x8] sm:$0xff]
        %v171 = vld [vmem:[%s2] sm:$0xff]
        %v172 = vld [vmem:[%s2 + $0x8] sm:$0xff]
        %v173 = vld [vmem:[%s168] sm:$0xff]
        %v174 = vld [vmem:[%s168 + $0x8] sm:$0xff]
        %v175 = vld [vmem:[%s168 + $0x10] sm:$0xff]
        %v176 = vld [vmem:[%s168 + $0x18] sm:$0xff]
        %v177 = vld [vmem:[%s168 + $0x20] sm:$0xff]
        %v178 = vld [vmem:[%s168 + $0x28] sm:$0xff]
        %v179 = vld [vmem:[%s168 + $0x30] sm:$0xff]
        %v180 = vld [vmem:[%s168 + $0x38] sm:$0xff]
        %v181 = vld [vmem:[%s168 + $0x40] sm:$0xf]
        %v182 = vld [vmem:[%s168 + $0x48] sm:$0xf]
        %184 = vset.pattern.permute.xlu0 0
        %185 = vperm.xlu0 %184, %v171
        %v186 = vpop.permute.xlu0 %185
        %189 = vset.pattern.permute.xlu0 0
        %190 = vperm.xlu0 %189, %v172
        %v191 = vpop.permute.xlu0 %190
        %vm193 = vcmask 293888
        %v195 = vsel %vm193, %v169, 0
        %v198 = vsel %vm193, %v170, 0
        %vm200 = vcmask 1043456
        %v202 = vsel %vm200, %v181, 0
        %v205 = vsel %vm200, %v182, 0
        %207 = vmatprep.subr.mxu0 %v174
        %208 = vmatpush1.msra.mxu0 %v173
        %209 = vmatprep.subr.mxu0 %v176
        %210 = vmatpush1.msra.mxu0 %v175
        %211 = vmatprep.subr.mxu0 %v178
        %212 = vmatpush1.msra.mxu0 %v177
        %213 = vmatprep.subr.mxu0 %v180
        %214 = vmatpush1.msra.mxu0 %v179
        %215 = vmatprep.subr.mxu0 %v205
        %216 = vmatpush1.msra.mxu0 %v202
        %217 = vmatprep.subr.mxu0 0.0
        %218 = vmatpush1.msra.mxu0 0.0
        %219 = vmatprep.subr.mxu0 0.0
        %220 = vmatpush1.msra.mxu0 0.0
        %221 = vmatprep.subr.mxu0 0.0
        %222 = vmatpush1.msra.mxu0 0.0
        %223 = vmatprep.subr.mxu0 0.0
        %224 = vmatpush1.msra.mxu0 0.0
        %225 = vmatprep.subr.mxu0 0.0
        %226 = vmatpush1.msra.mxu0 0.0
        %227 = vmatprep.subr.mxu0 0.0
        %228 = vmatpush1.msra.mxu0 0.0
        %229 = vmatprep.subr.mxu0 0.0
        %230 = vmatpush1.msra.mxu0 0.0
        %231 = vmatprep.subr.mxu0 0.0
        %232 = vmatpush1.msra.mxu0 0.0
        %233 = vmatprep.subr.mxu0 0.0
        %234 = vmatpush1.msra.mxu0 0.0
        %235 = vmatprep.subr.mxu0 0.0
        %236 = vmatpush1.msra.mxu0 0.0
        %237 = vmatprep.subr.mxu0 0.0
        %238 = vmatpush1.msra.mxu0 0.0
        %239 = vmatprep.subr.mxu0 0.0
        %240 = vmatpush1.msra.mxu0 0.0
        %241 = vmatprep.subr.mxu0 0.0
        %242 = vmatpush1.msra.mxu0 0.0
        %243 = vmatprep.subr.mxu0 0.0
        %244 = vmatpush1.msra.mxu0 0.0
        %245 = vmatprep.subr.mxu0 0.0
        %246 = vmatpush1.msra.mxu0 0.0
        %247 = vmatprep.subr.mxu0 0.0
        %248 = vmatpush1.msra.mxu0 0.0
        %249 = vmatprep.subr.mxu0 0.0
        %250 = vmatpush1.msra.mxu0 0.0
        %251 = vmatprep.subr.mxu0 0.0
        %252 = vmatpush1.msra.mxu0 0.0
        %253 = vmatprep.subr.mxu0 0.0
        %254 = vmatpush1.msra.mxu0 0.0
        %255 = vmatprep.subr.mxu0 0.0
        %256 = vmatpush1.msra.mxu0 0.0
        %257 = vmatprep.subr.mxu0 0.0
        %258 = vmatpush1.msra.mxu0 0.0
        %259 = vmatprep.subr.mxu0 0.0
        %260 = vmatpush1.msra.mxu0 0.0
        %261 = vmatprep.subr.mxu0 0.0
        %262 = vmatpush1.msra.mxu0 0.0
        %263 = vmatprep.subr.mxu0 0.0
        %264 = vmatpush1.msra.mxu0 0.0
        %265 = vmatprep.subr.mxu0 0.0
        %266 = vmatpush1.msra.mxu0 0.0
        %267 = vmatprep.subr.mxu0 0.0
        %268 = vmatpush1.msra.mxu0 0.0
        %269 = vmatprep.subr.mxu0 0.0
        %270 = vmatpush1.msra.mxu0 0.0
        %271 = vmatprep.mubr.f32.mxu0 0.0
        %272 = vmatmul.mubr.f32.gmra.mrb[0].mxu0 %v195
        %v273 = vpop.f32.mrb[0].mxu0
        %v274 = vadd.f32 %v186, %v273
        %v275 = vpop.f32.mrb[0].mxu0
        %v276 = vadd.f32 %v186, %v275
        %277 = vmatprep.mubr.f32.mxu0 0.0
        %278 = vmatmul.mubr.f32.gmra.mrb[0].mxu0 %v198
        %v279 = vpop.f32.mrb[0].mxu0
        %v280 = vadd.f32 %v191, %v279
        %v281 = vpop.f32.mrb[0].mxu0
        %v282 = vadd.f32 %v191, %v281
        %283 = vdwg.mxu0
        %v284 = vxor.u32 %v274, 2147483648
        %v285 = vxor.u32 %v276, 2147483648
        %v286 = vmul.f32 %v284, 1.442695
        %v287 = vpow.pop %v286
        %v288 = vmul.f32 %v285, 1.442695
        %v289 = vpow.pop %v288
        %v290 = vadd.f32 %v287, 1.0
        %v291 = vadd.f32 %v289, 1.0
        %v292 = vrcp.pop %v290
        %v293 = vmul.f32 1.0, %v292
        %v294 = vrcp.pop %v291
        %v295 = vmul.f32 1.0, %v294
        %v296 = vmax.f32 %v280, 0.0
        %v297 = vmax.f32 %v282, 0.0
        %v298 = vmul.f32 %v296, %v293
        %v299 = vmul.f32 %v297, %v295
        %300 = vst [vmem:[%s163] sm:$0xff] %v298
        %301 = vst [vmem:[%s163 + $0x8] sm:$0xff] %v299
        %s302 = sand.u32 %s93, 1
        %s303 = scalar_lea.sflag [#allocation3], %s302
        %s304 = sand.u32 %s93, 1
        %s305 = smul.addr %s304, 16
        %s306 = scalar_lea.vmem [#allocation2], %s305
        // Predicated region
        $region33: #{tpu_custom_call.1} parent=31 // pred_check
          %p307 = pneg %p103
        $region34: #{tpu_custom_call.1} parent=31 // pred_check_branch
          %309 = sbr.rel (%p307) target = $region36
        $region35: #{tpu_custom_call.1} parent=31 // pred_region
          %s311 = ssub.s32 256, 256
          %312 = vsyncadd %s303, %s311
          %s313 = smul.addr %s17, 2
          %s314 = smul.addr %s313, 128
          %s315 = scalar_lea.hbm %s3, %s314
          %s317 = sshll.u32 %s306, 4
          %s318 = int_to_ptr.vmem [resolvable:$true] %s317
          %320 = dma.vmem_to_hbm [thread:$0]  %s318, 256, %s315, %s303
        $region36: #{tpu_custom_call.1} parent=31 // pred_fallthru
          _
      $region32: #{tpu_custom_call.1} parent=5 // pred_fallthru
        _
      %p321 = scmp.le.s32.totalorder 2, %s12
      // Predicated region
      $region37: #{tpu_custom_call.1} parent=5 // pred_check
        %p322 = pneg %p321
      $region38: #{tpu_custom_call.1} parent=5 // pred_check_branch
        %324 = sbr.rel (%p322) target = $region40
      $region39: #{tpu_custom_call.1} parent=5 // pred_region
        %s325 = ssub.s32 %s12, 2
        // Predicated region
        $region41: #{tpu_custom_call.1} parent=39 // pred_check
          %p326 = pneg %p109
        $region42: #{tpu_custom_call.1} parent=39 // pred_check_branch
          %328 = sbr.rel (%p326) target = $region44
        $region43: #{tpu_custom_call.1} parent=39 // pred_region
          %s329 = sand.u32 %s94, 1
          %s330 = scalar_lea.sflag [#allocation3], %s329
          %s331 = sand.u32 %s94, 1
          %s332 = smul.addr %s331, 16
          %s333 = scalar_lea.vmem [#allocation2], %s332
          %334 = dma.done %s330, 256
        $region44: #{tpu_custom_call.1} parent=39 // pred_fallthru
          _
      $region40: #{tpu_custom_call.1} parent=5 // pred_fallthru
        _
    $region6: #{tpu_custom_call.1} parent=1 // loop_footer
      %s16 = sadd.s32 1, %s12
    $region7: #{tpu_custom_call.1} parent=1 // loop_footer_branch
      %11 = sbr.rel target = $region3
    $region8: #{tpu_custom_call.1} parent=1 // loop_exit
      _
    %335 = vsyncpa [#allocation3], 1
    %s336 = scalar_lea.sflag [#allocation3], 1
    %337 = vsyncpa %s336, 1

</llo_original>
